<compile_context>
chip_gen: v6e
topology: v6e:2x2x1
jax: 0.10.0
libtpu: 0.0.40
codegen_flags: <defaults>
</compile_context>

<pallas_src>
import jax
import jax.numpy as jnp
from jax.experimental import pallas as pl
from jax.experimental.pallas import tpu as pltpu


TOK_TILE = 128  # tokens (output rows) processed per grid step

# Conservative bound on a VMEM-resident raw table (leaves headroom for the
# token/output tiles under the raised scoped-VMEM limit on all chips,
# including v7x's 64 MiB physical VMEM).
_MAX_RESIDENT_TABLE_BYTES = 16 * 1024 * 1024
_VMEM_LIMIT_BYTES = 40 * 1024 * 1024


def _normalized_embed_kernel(idx_ref, w_ref, out_ref):
    # idx_ref : (TOK_TILE, 1) int32  -- this tile's token indices (sublane axis)
    # w_ref   : (V, D)               -- raw table, VMEM-resident (DMAed once)
    # out_ref : (TOK_TILE, D)        -- lane/sublane-dense output slab
    idx = idx_ref[...]                                        # (T, 1)
    t = idx.shape[0]
    v = w_ref.shape[0]

    # one_hot[t, v] = (idx[t] == v); broadcast of the (T, 1) column across
    # lanes is cheap.
    one_hot = (idx == jax.lax.broadcasted_iota(jnp.int32, (t, v), 1)
               ).astype(w_ref.dtype)                          # (T, V)

    # Gather the raw rows as an MXU matmul: (T, V) @ (V, D) -> (T, D) in f32.
    rows = jnp.dot(one_hot, w_ref[...],
                   preferred_element_type=jnp.float32)        # (T, D)

    # L2-normalize only the gathered rows (== normalizing the table first).
    # F.normalize: v / max(||v||, 1e-12)  ==  v * rsqrt(max(||v||^2, 1e-24))
    sq = jnp.sum(rows * rows, axis=-1, keepdims=True)         # (T, 1)
    inv = jax.lax.rsqrt(jnp.maximum(sq, 1e-24))               # EUP rsqrt
    out_ref[...] = (rows * inv).astype(out_ref.dtype)


@jax.jit
def normalized_embedding(x, weight):
    """x: integer indices of any shape; weight: (num_embeddings, D) float."""
    num_embeddings, embed_dim = weight.shape

    table_bytes = num_embeddings * embed_dim * weight.dtype.itemsize
    if table_bytes > _MAX_RESIDENT_TABLE_BYTES:
        # TODO(synk): large-vocab manual-DMA gather path (pl.ANY + async copies).
        raise NotImplementedError("table too large for VMEM-resident gather")

    idx_flat = x.reshape(-1).astype(jnp.int32)                # (N,)
    n_tokens = idx_flat.shape[0]
    n_tiles = pl.cdiv(n_tokens, TOK_TILE)
    n_pad = n_tiles * TOK_TILE
    # Pad with index 0 (always a valid row) so no OOB lookup ever happens.
    idx_padded = jnp.pad(idx_flat, (0, n_pad - n_tokens))
    idx_col = idx_padded.reshape(n_pad, 1)                    # indices on sublanes

    out_flat = pl.pallas_call(
        _normalized_embed_kernel,
        out_shape=jax.ShapeDtypeStruct((n_pad, embed_dim), weight.dtype),
        grid=(n_tiles,),
        in_specs=[
            # This tile's indices.
            pl.BlockSpec((TOK_TILE, 1), lambda i: (i, 0)),
            # Whole raw table, constant block index -> DMAed once and kept
            # VMEM-resident across the token loop.
            pl.BlockSpec((num_embeddings, embed_dim), lambda i: (0, 0)),
        ],
        out_specs=pl.BlockSpec((TOK_TILE, embed_dim), lambda i: (i, 0)),
        compiler_params=pltpu.CompilerParams(
            # Tokens are fully independent (no cross-step state) -> shard the
            # token axis across TensorCores on v7x.
            dimension_semantics=("parallel",),
            vmem_limit_bytes=_VMEM_LIMIT_BYTES,
        ),
    )(idx_col, weight)

    return out_flat[:n_tokens].reshape(x.shape + (embed_dim,))


if __name__ == "__main__":
    num_embeddings = 64
    embedding_dim = 128   # lane-dense output (multiple of 128)

    key = jax.random.PRNGKey(0)
    k_w, k_x = jax.random.split(key)

    # nn.Embedding default init: N(0, 1)
    weight = jax.random.normal(k_w, (num_embeddings, embedding_dim), jnp.float32)

    # Indices: batch=2, seq=8
    x = jax.random.randint(k_x, (2, 8), minval=0, maxval=num_embeddings,
                           dtype=jnp.int32)

    out = normalized_embedding(x, weight)
    out = jax.block_until_ready(out)

    # Pure-JAX reference: normalize the whole table, then gather.
    norms = jnp.sqrt(jnp.sum(weight * weight, axis=1, keepdims=True))
    w_norm_ref = weight / jnp.maximum(norms, 1e-12)
    ref = w_norm_ref[x]

    assert out.shape == x.shape + (embedding_dim,)
    assert jnp.allclose(out, ref, atol=1e-5, rtol=1e-5)

    print("KERNEL_OK")
</pallas_src>

<mosaic_0001>
module attributes {stable_mosaic.version = 11 : i64} {
  func.func @_normalized_embed_kernel(%arg0: i32, %arg1: memref<128x1xi32, #tpu.memory_space<vmem>>, %arg2: memref<64x128xf32, #tpu.memory_space<vmem>>, %arg3: memref<128x128xf32, #tpu.memory_space<vmem>>) attributes {dimension_semantics = [#tpu.dimension_semantics<parallel>], iteration_bounds = array<i64: 1>, scalar_prefetch = 0 : i64, scratch_operands = 0 : i64, tpu.core_type = #tpu.core_type<tc>, window_params = [{transform_indices = @transform_0, window_bounds = array<i64: 128, 1>}, {pipeline_mode = #tpu.pipeline_mode<synchronous>, transform_indices = @transform_1, window_bounds = array<i64: 64, 128>}, {transform_indices = @transform_2, window_bounds = array<i64: 128, 128>}]} {
    %c0 = arith.constant 0 : index
    %c0_0 = arith.constant 0 : index
    %0 = vector.load %arg1[%c0, %c0_0] : memref<128x1xi32, #tpu.memory_space<vmem>>, vector<128x1xi32>
    %1 = tpu.iota {dimensions = array<i32: 1>} : vector<128x64xi32>
    %2 = vector.broadcast %0 : vector<128x1xi32> to vector<128x64xi32>
    %3 = arith.cmpi eq, %2, %1 : vector<128x64xi32>
    %4 = arith.extui %3 : vector<128x64xi1> to vector<128x64xi32>
    %5 = arith.sitofp %4 : vector<128x64xi32> to vector<128x64xf32>
    %c0_1 = arith.constant 0 : index
    %c0_2 = arith.constant 0 : index
    %6 = vector.load %arg2[%c0_1, %c0_2] : memref<64x128xf32, #tpu.memory_space<vmem>>, vector<64x128xf32>
    %cst = arith.constant dense<0.000000e+00> : vector<128x128xf32>
    %7 = tpu.matmul %5, %6, %cst {dimension_numbers = #tpu.dot_dimension_numbers<[1], [0], [0], [1], [0, 0, 1, 1], [], []>} : vector<128x64xf32>, vector<64x128xf32>, vector<128x128xf32> -> vector<128x128xf32>
    %8 = arith.mulf %7, %7 : vector<128x128xf32>
    %cst_3 = arith.constant dense<0.000000e+00> : vector<128xf32>
    %9 = vector.multi_reduction <add>, %8, %cst_3 [1] : vector<128x128xf32> to vector<128xf32>
    %10 = vector.shape_cast %9 : vector<128xf32> to vector<128x1xf32>
    %cst_4 = arith.constant 1.000000e-24 : f32
    %11 = vector.broadcast %cst_4 : f32 to vector<128x1xf32>
    %12 = arith.maximumf %10, %11 : vector<128x1xf32>
    %13 = math.rsqrt %12 : vector<128x1xf32>
    %14 = vector.broadcast %13 : vector<128x1xf32> to vector<128x128xf32>
    %15 = arith.mulf %7, %14 : vector<128x128xf32>
    %c0_5 = arith.constant 0 : index
    %c0_6 = arith.constant 0 : index
    %16 = vector.load %arg3[%c0_5, %c0_6] : memref<128x128xf32, #tpu.memory_space<vmem>>, vector<128x128xf32>
    tpu.vector_store %arg3[%c0_5, %c0_6], %15 {strides = array<i32>} : memref<128x128xf32, #tpu.memory_space<vmem>>, vector<128x128xf32>,
    return
  }
  func.func @transform_0(%arg0: i32) -> (i32, i32) {
    %c0_i32 = arith.constant 0 : i32
    %c0_i32_0 = arith.constant 0 : i32
    return %arg0, %c0_i32 : i32, i32
  }
  func.func @transform_1(%arg0: i32) -> (i32, i32) {
    %c0_i32 = arith.constant 0 : i32
    %c0_i32_0 = arith.constant 0 : i32
    %c0_i32_1 = arith.constant 0 : i32
    return %c0_i32, %c0_i32_0 : i32, i32
  }
  func.func @transform_2(%arg0: i32) -> (i32, i32) {
    %c0_i32 = arith.constant 0 : i32
    %c0_i32_0 = arith.constant 0 : i32
    return %arg0, %c0_i32 : i32, i32
  }
}

</mosaic_0001>

<llo_original>
// kernel: normalized_embedding.1
$region0: #{normalized_embedding.1}
  #allocation0 [shape = 'u32[]', space=smem, size = 0x4, offset = 0x4, fixed_abs, tag = 'smem constant byte address 0x4 - core index']
  #allocation1 [shape = 'u32[144,128]{1,0:T(1,128)}', space=vmem, size = 0x12000, scoped, tag = 'internal scratch']
  %s0 = inlined_call_operand.vmem [shape: s32[128,1], index: 0, kind: input, shape index: {}]
  %s1 = inlined_call_operand.vmem [shape: f32[64,128], index: 1, kind: input, shape index: {}]
  %s2 = inlined_call_operand.vmem [shape: f32[128,128], index: 2, kind: output, shape index: {}]
  %s3 = sld [smem:[#allocation0]]
  $region18: #{normalized_embedding.1} parent=0
    _
  %s5 = ssub.s32 1, %s3
  %s6 = scalar_select 0, %s5, %s3
  // Predicated region
  $region2: #{normalized_embedding.1} parent=0 // pred_check
    _
  $region3: #{normalized_embedding.1} parent=0 // pred_check_branch
    %8 = sbr.rel (0) target = $region5
  $region4: #{normalized_embedding.1} parent=0 // pred_region
    _
  $region5: #{normalized_embedding.1} parent=0 // pred_fallthru
    _
  // Predicated region
  $region6: #{normalized_embedding.1} parent=0 // pred_check
    _
  $region7: #{normalized_embedding.1} parent=0 // pred_check_branch
    %10 = sbr.rel (0) target = $region9
  $region8: #{normalized_embedding.1} parent=0 // pred_region
    _
  $region9: #{normalized_embedding.1} parent=0 // pred_fallthru
    _
  %v11 = vld [vmem:[%s0] sm:$0xff]
  %v12 = vld [vmem:[%s0 + $0x8] sm:$0xff]
  %v13 = vld [vmem:[%s0 + $0x10] sm:$0xff]
  %v14 = vld [vmem:[%s0 + $0x18] sm:$0xff]
  %v15 = vld [vmem:[%s0 + $0x20] sm:$0xff]
  %v16 = vld [vmem:[%s0 + $0x28] sm:$0xff]
  %v17 = vld [vmem:[%s0 + $0x30] sm:$0xff]
  %v18 = vld [vmem:[%s0 + $0x38] sm:$0xff]
  %v19 = vld [vmem:[%s0 + $0x40] sm:$0xff]
  %v20 = vld [vmem:[%s0 + $0x48] sm:$0xff]
  %v21 = vld [vmem:[%s0 + $0x50] sm:$0xff]
  %v22 = vld [vmem:[%s0 + $0x58] sm:$0xff]
  %v23 = vld [vmem:[%s0 + $0x60] sm:$0xff]
  %v24 = vld [vmem:[%s0 + $0x68] sm:$0xff]
  %v25 = vld [vmem:[%s0 + $0x70] sm:$0xff]
  %v26 = vld [vmem:[%s0 + $0x78] sm:$0xff]
  %v27 = vlaneseq
  %v28 = vand.u32 %v27, 127
  %29 = vset.pattern.permute.xlu0 0
  %30 = vperm.xlu0 %29, %v11
  %v31 = vpop.permute.xlu0 %30
  %32 = vset.pattern.permute.xlu0 0
  %33 = vperm.xlu0 %32, %v12
  %v34 = vpop.permute.xlu0 %33
  %35 = vset.pattern.permute.xlu0 0
  %36 = vperm.xlu0 %35, %v13
  %v37 = vpop.permute.xlu0 %36
  %38 = vset.pattern.permute.xlu0 0
  %39 = vperm.xlu0 %38, %v14
  %v40 = vpop.permute.xlu0 %39
  %41 = vset.pattern.permute.xlu0 0
  %42 = vperm.xlu0 %41, %v15
  %v43 = vpop.permute.xlu0 %42
  %44 = vset.pattern.permute.xlu0 0
  %45 = vperm.xlu0 %44, %v16
  %v46 = vpop.permute.xlu0 %45
  %47 = vset.pattern.permute.xlu0 0
  %48 = vperm.xlu0 %47, %v17
  %v49 = vpop.permute.xlu0 %48
  %50 = vset.pattern.permute.xlu0 0
  %51 = vperm.xlu0 %50, %v18
  %v52 = vpop.permute.xlu0 %51
  %53 = vset.pattern.permute.xlu0 0
  %54 = vperm.xlu0 %53, %v19
  %v55 = vpop.permute.xlu0 %54
  %56 = vset.pattern.permute.xlu0 0
  %57 = vperm.xlu0 %56, %v20
  %v58 = vpop.permute.xlu0 %57
  %59 = vset.pattern.permute.xlu0 0
  %60 = vperm.xlu0 %59, %v21
  %v61 = vpop.permute.xlu0 %60
  %62 = vset.pattern.permute.xlu0 0
  %63 = vperm.xlu0 %62, %v22
  %v64 = vpop.permute.xlu0 %63
  %65 = vset.pattern.permute.xlu0 0
  %66 = vperm.xlu0 %65, %v23
  %v67 = vpop.permute.xlu0 %66
  %68 = vset.pattern.permute.xlu0 0
  %69 = vperm.xlu0 %68, %v24
  %v70 = vpop.permute.xlu0 %69
  %71 = vset.pattern.permute.xlu0 0
  %72 = vperm.xlu0 %71, %v25
  %v73 = vpop.permute.xlu0 %72
  %74 = vset.pattern.permute.xlu0 0
  %75 = vperm.xlu0 %74, %v26
  %v76 = vpop.permute.xlu0 %75
  %vm77 = vcmp.eq.s32.totalorder %v31, %v28
  %vm78 = vcmp.eq.s32.totalorder %v34, %v28
  %vm79 = vcmp.eq.s32.totalorder %v37, %v28
  %vm80 = vcmp.eq.s32.totalorder %v40, %v28
  %vm81 = vcmp.eq.s32.totalorder %v43, %v28
  %vm82 = vcmp.eq.s32.totalorder %v46, %v28
  %vm83 = vcmp.eq.s32.totalorder %v49, %v28
  %vm84 = vcmp.eq.s32.totalorder %v52, %v28
  %vm85 = vcmp.eq.s32.totalorder %v55, %v28
  %vm86 = vcmp.eq.s32.totalorder %v58, %v28
  %vm87 = vcmp.eq.s32.totalorder %v61, %v28
  %vm88 = vcmp.eq.s32.totalorder %v64, %v28
  %vm89 = vcmp.eq.s32.totalorder %v67, %v28
  %vm90 = vcmp.eq.s32.totalorder %v70, %v28
  %vm91 = vcmp.eq.s32.totalorder %v73, %v28
  %vm92 = vcmp.eq.s32.totalorder %v76, %v28
  %v93 = vsel %vm77, 1, 0
  %v94 = vsel %vm78, 1, 0
  %v95 = vsel %vm79, 1, 0
  %v96 = vsel %vm80, 1, 0
  %v97 = vsel %vm81, 1, 0
  %v98 = vsel %vm82, 1, 0
  %v99 = vsel %vm83, 1, 0
  %v100 = vsel %vm84, 1, 0
  %v101 = vsel %vm85, 1, 0
  %v102 = vsel %vm86, 1, 0
  %v103 = vsel %vm87, 1, 0
  %v104 = vsel %vm88, 1, 0
  %v105 = vsel %vm89, 1, 0
  %v106 = vsel %vm90, 1, 0
  %v107 = vsel %vm91, 1, 0
  %v108 = vsel %vm92, 1, 0
  %v109 = vcvt.s32.f32 %v93
  %v110 = vcvt.s32.f32 %v94
  %v111 = vcvt.s32.f32 %v95
  %v112 = vcvt.s32.f32 %v96
  %v113 = vcvt.s32.f32 %v97
  %v114 = vcvt.s32.f32 %v98
  %v115 = vcvt.s32.f32 %v99
  %v116 = vcvt.s32.f32 %v100
  %v117 = vcvt.s32.f32 %v101
  %v118 = vcvt.s32.f32 %v102
  %v119 = vcvt.s32.f32 %v103
  %v120 = vcvt.s32.f32 %v104
  %v121 = vcvt.s32.f32 %v105
  %v122 = vcvt.s32.f32 %v106
  %v123 = vcvt.s32.f32 %v107
  %v124 = vcvt.s32.f32 %v108
  %v125 = vld [vmem:[%s1] sm:$0xff]
  %v126 = vld [vmem:[%s1 + $0x8] sm:$0xff]
  %v127 = vld [vmem:[%s1 + $0x10] sm:$0xff]
  %v128 = vld [vmem:[%s1 + $0x18] sm:$0xff]
  %v129 = vld [vmem:[%s1 + $0x20] sm:$0xff]
  %v130 = vld [vmem:[%s1 + $0x28] sm:$0xff]
  %v131 = vld [vmem:[%s1 + $0x30] sm:$0xff]
  %v132 = vld [vmem:[%s1 + $0x38] sm:$0xff]
  %vm133 = vcmask 523264
  %v135 = vsel %vm133, %v109, 0
  %v138 = vsel %vm133, %v110, 0
  %v141 = vsel %vm133, %v111, 0
  %v144 = vsel %vm133, %v112, 0
  %v147 = vsel %vm133, %v113, 0
  %v150 = vsel %vm133, %v114, 0
  %v153 = vsel %vm133, %v115, 0
  %v156 = vsel %vm133, %v116, 0
  %v159 = vsel %vm133, %v117, 0
  %v162 = vsel %vm133, %v118, 0
  %v165 = vsel %vm133, %v119, 0
  %v168 = vsel %vm133, %v120, 0
  %v171 = vsel %vm133, %v121, 0
  %v174 = vsel %vm133, %v122, 0
  %v177 = vsel %vm133, %v123, 0
  %v180 = vsel %vm133, %v124, 0
  %182 = vmatprep.subr.mxu0 0.0
  %183 = vmatpush1.msra.mxu0 0.0
  %184 = vmatprep.subr.mxu0 0.0
  %185 = vmatpush1.msra.mxu0 0.0
  %186 = vmatprep.subr.mxu0 0.0
  %187 = vmatpush1.msra.mxu0 0.0
  %188 = vmatprep.subr.mxu0 0.0
  %189 = vmatpush1.msra.mxu0 0.0
  %190 = vmatprep.subr.mxu0 0.0
  %191 = vmatpush1.msra.mxu0 0.0
  %192 = vmatprep.subr.mxu0 0.0
  %193 = vmatpush1.msra.mxu0 0.0
  %194 = vmatprep.subr.mxu0 0.0
  %195 = vmatpush1.msra.mxu0 0.0
  %196 = vmatprep.subr.mxu0 0.0
  %197 = vmatpush1.msra.mxu0 0.0
  %198 = vmatprep.subr.mxu0 0.0
  %199 = vmatpush1.msra.mxu0 %v132
  %200 = vmatprep.subr.mxu0 0.0
  %201 = vmatpush1.msra.mxu0 %v131
  %202 = vmatprep.subr.mxu0 0.0
  %203 = vmatpush1.msra.mxu0 %v130
  %204 = vmatprep.subr.mxu0 0.0
  %205 = vmatpush1.msra.mxu0 %v129
  %206 = vmatprep.subr.mxu0 0.0
  %207 = vmatpush1.msra.mxu0 %v128
  %208 = vmatprep.subr.mxu0 0.0
  %209 = vmatpush1.msra.mxu0 %v127
  %210 = vmatprep.subr.mxu0 0.0
  %211 = vmatpush1.msra.mxu0 %v126
  %212 = vmatprep.subr.mxu0 0.0
  %213 = vmatpush1.msra.mxu0 %v125
  %214 = vmatprep.subr.mxu0 0.0
  %215 = vmatpush2.msra.mxu0 0.0
  %216 = vmatprep.subr.mxu0 0.0
  %217 = vmatpush2.msra.mxu0 0.0
  %218 = vmatprep.subr.mxu0 0.0
  %219 = vmatpush2.msra.mxu0 0.0
  %220 = vmatprep.subr.mxu0 0.0
  %221 = vmatpush2.msra.mxu0 0.0
  %222 = vmatprep.subr.mxu0 0.0
  %223 = vmatpush2.msra.mxu0 0.0
  %224 = vmatprep.subr.mxu0 0.0
  %225 = vmatpush2.msra.mxu0 0.0
  %226 = vmatprep.subr.mxu0 0.0
  %227 = vmatpush2.msra.mxu0 0.0
  %228 = vmatprep.subr.mxu0 0.0
  %229 = vmatpush2.msra.mxu0 0.0
  %230 = vmatprep.subr.mxu0 0.0
  %231 = vmatpush2.msra.mxu0 0.0
  %232 = vmatprep.subr.mxu0 0.0
  %233 = vmatpush2.msra.mxu0 0.0
  %234 = vmatprep.subr.mxu0 0.0
  %235 = vmatpush2.msra.mxu0 0.0
  %236 = vmatprep.subr.mxu0 0.0
  %237 = vmatpush2.msra.mxu0 0.0
  %238 = vmatprep.subr.mxu0 0.0
  %239 = vmatpush2.msra.mxu0 0.0
  %240 = vmatprep.subr.mxu0 0.0
  %241 = vmatpush2.msra.mxu0 0.0
  %242 = vmatprep.subr.mxu0 0.0
  %243 = vmatpush2.msra.mxu0 0.0
  %244 = vmatprep.subr.mxu0 0.0
  %245 = vmatpush2.msra.mxu0 0.0
  %246 = vmatprep.mubr.f32.mxu0 0.0
  %247 = vmatmul.mubr.f32.gmra.mxu0 %v135
  %v248 = vpop.f32.mrf.mxu0
  %v249 = vadd.f32 0.0, %v248
  %v250 = vpop.f32.mrf.mxu0
  %251 = vmatprep.mubr.f32.mxu0 0.0
  %252 = vmatmul.mubr.f32.gmra.mxu0 %v138
  %v253 = vpop.f32.mrf.mxu0
  %v254 = vadd.f32 0.0, %v253
  %v255 = vpop.f32.mrf.mxu0
  %256 = vmatprep.mubr.f32.mxu0 0.0
  %257 = vmatmul.mubr.f32.gmra.mxu0 %v141
  %v258 = vpop.f32.mrf.mxu0
  %v259 = vadd.f32 0.0, %v258
  %v260 = vpop.f32.mrf.mxu0
  %261 = vmatprep.mubr.f32.mxu0 0.0
  %262 = vmatmul.mubr.f32.gmra.mxu0 %v144
  %v263 = vpop.f32.mrf.mxu0
  %v264 = vadd.f32 0.0, %v263
  %v265 = vpop.f32.mrf.mxu0
  %266 = vmatprep.mubr.f32.mxu0 0.0
  %267 = vmatmul.mubr.f32.gmra.mxu0 %v147
  %v268 = vpop.f32.mrf.mxu0
  %v269 = vadd.f32 0.0, %v268
  %v270 = vpop.f32.mrf.mxu0
  %271 = vmatprep.mubr.f32.mxu0 0.0
  %272 = vmatmul.mubr.f32.gmra.mxu0 %v150
  %v273 = vpop.f32.mrf.mxu0
  %v274 = vadd.f32 0.0, %v273
  %v275 = vpop.f32.mrf.mxu0
  %276 = vmatprep.mubr.f32.mxu0 0.0
  %277 = vmatmul.mubr.f32.gmra.mxu0 %v153
  %v278 = vpop.f32.mrf.mxu0
  %v279 = vadd.f32 0.0, %v278
  %v280 = vpop.f32.mrf.mxu0
  %281 = vmatprep.mubr.f32.mxu0 0.0
  %282 = vmatmul.mubr.f32.gmra.mxu0 %v156
  %v283 = vpop.f32.mrf.mxu0
  %v284 = vadd.f32 0.0, %v283
  %v285 = vpop.f32.mrf.mxu0
  %286 = vmatprep.mubr.f32.mxu0 0.0
  %287 = vmatmul.mubr.f32.gmra.mxu0 %v159
  %v288 = vpop.f32.mrf.mxu0
  %v289 = vadd.f32 0.0, %v288
  %v290 = vpop.f32.mrf.mxu0
  %291 = vmatprep.mubr.f32.mxu0 0.0
  %292 = vmatmul.mubr.f32.gmra.mxu0 %v162
  %v293 = vpop.f32.mrf.mxu0
  %v294 = vadd.f32 0.0, %v293
  %v295 = vpop.f32.mrf.mxu0
  %296 = vmatprep.mubr.f32.mxu0 0.0
  %297 = vmatmul.mubr.f32.gmra.mxu0 %v165
  %v298 = vpop.f32.mrf.mxu0
  %v299 = vadd.f32 0.0, %v298
  %v300 = vpop.f32.mrf.mxu0
  %301 = vmatprep.mubr.f32.mxu0 0.0
  %302 = vmatmul.mubr.f32.gmra.mxu0 %v168
  %v303 = vpop.f32.mrf.mxu0
  %v304 = vadd.f32 0.0, %v303
  %v305 = vpop.f32.mrf.mxu0
  %306 = vmatprep.mubr.f32.mxu0 0.0
  %307 = vmatmul.mubr.f32.gmra.mxu0 %v171
  %v308 = vpop.f32.mrf.mxu0
  %v309 = vadd.f32 0.0, %v308
  %v310 = vpop.f32.mrf.mxu0
  %311 = vmatprep.mubr.f32.mxu0 0.0
  %312 = vmatmul.mubr.f32.gmra.mxu0 %v174
  %v313 = vpop.f32.mrf.mxu0
  %v314 = vadd.f32 0.0, %v313
  %v315 = vpop.f32.mrf.mxu0
  %316 = vmatprep.mubr.f32.mxu0 0.0
  %317 = vmatmul.mubr.f32.gmra.mxu0 %v177
  %v318 = vpop.f32.mrf.mxu0
  %v319 = vadd.f32 0.0, %v318
  %v320 = vpop.f32.mrf.mxu0
  %321 = vmatprep.mubr.f32.mxu0 0.0
  %322 = vmatmul.mubr.f32.gmra.mxu0 %v180
  %v323 = vpop.f32.mrf.mxu0
  %v324 = vadd.f32 0.0, %v323
  %v325 = vpop.f32.mrf.mxu0
  %326 = vdwg.mxu0
  %v327 = vmul.f32 %v249, %v249
  %v328 = vmul.f32 %v254, %v254
  %v329 = vmul.f32 %v259, %v259
  %v330 = vmul.f32 %v264, %v264
  %v331 = vmul.f32 %v269, %v269
  %v332 = vmul.f32 %v274, %v274
  %v333 = vmul.f32 %v279, %v279
  %v334 = vmul.f32 %v284, %v284
  %v335 = vmul.f32 %v289, %v289
  %v336 = vmul.f32 %v294, %v294
  %v337 = vmul.f32 %v299, %v299
  %v338 = vmul.f32 %v304, %v304
  %v339 = vmul.f32 %v309, %v309
  %v340 = vmul.f32 %v314, %v314
  %v341 = vmul.f32 %v319, %v319
  %v342 = vmul.f32 %v324, %v324
  %343 = vadd.xlane.f32.xlu0 %v327
  %v344 = vpop.xlane.xlu0 %343
  %345 = vadd.xlane.f32.xlu0 %v328
  %v346 = vpop.xlane.xlu0 %345
  %347 = vadd.xlane.f32.xlu0 %v329
  %v348 = vpop.xlane.xlu0 %347
  %349 = vadd.xlane.f32.xlu0 %v330
  %v350 = vpop.xlane.xlu0 %349
  %351 = vadd.xlane.f32.xlu0 %v331
  %v352 = vpop.xlane.xlu0 %351
  %353 = vadd.xlane.f32.xlu0 %v332
  %v354 = vpop.xlane.xlu0 %353
  %355 = vadd.xlane.f32.xlu0 %v333
  %v356 = vpop.xlane.xlu0 %355
  %357 = vadd.xlane.f32.xlu0 %v334
  %v358 = vpop.xlane.xlu0 %357
  %359 = vadd.xlane.f32.xlu0 %v335
  %v360 = vpop.xlane.xlu0 %359
  %361 = vadd.xlane.f32.xlu0 %v336
  %v362 = vpop.xlane.xlu0 %361
  %363 = vadd.xlane.f32.xlu0 %v337
  %v364 = vpop.xlane.xlu0 %363
  %365 = vadd.xlane.f32.xlu0 %v338
  %v366 = vpop.xlane.xlu0 %365
  %367 = vadd.xlane.f32.xlu0 %v339
  %v368 = vpop.xlane.xlu0 %367
  %369 = vadd.xlane.f32.xlu0 %v340
  %v370 = vpop.xlane.xlu0 %369
  %371 = vadd.xlane.f32.xlu0 %v341
  %v372 = vpop.xlane.xlu0 %371
  %373 = vadd.xlane.f32.xlu0 %v342
  %v374 = vpop.xlane.xlu0 %373
  %v375 = vmax.f32 %v344, 1e-24
  %v376 = vmax.f32 %v346, 1e-24
  %v377 = vmax.f32 %v348, 1e-24
  %v378 = vmax.f32 %v350, 1e-24
  %v379 = vmax.f32 %v352, 1e-24
  %v380 = vmax.f32 %v354, 1e-24
  %v381 = vmax.f32 %v356, 1e-24
  %v382 = vmax.f32 %v358, 1e-24
  %v383 = vmax.f32 %v360, 1e-24
  %v384 = vmax.f32 %v362, 1e-24
  %v385 = vmax.f32 %v364, 1e-24
  %v386 = vmax.f32 %v366, 1e-24
  %v387 = vmax.f32 %v368, 1e-24
  %v388 = vmax.f32 %v370, 1e-24
  %v389 = vmax.f32 %v372, 1e-24
  %v390 = vmax.f32 %v374, 1e-24
  %v391 = vrsqrt.pop %v375
  %v392 = vrsqrt.pop %v376
  %v393 = vrsqrt.pop %v377
  %v394 = vrsqrt.pop %v378
  %v395 = vrsqrt.pop %v379
  %v396 = vrsqrt.pop %v380
  %v397 = vrsqrt.pop %v381
  %v398 = vrsqrt.pop %v382
  %v399 = vrsqrt.pop %v383
  %v400 = vrsqrt.pop %v384
  %v401 = vrsqrt.pop %v385
  %v402 = vrsqrt.pop %v386
  %v403 = vrsqrt.pop %v387
  %v404 = vrsqrt.pop %v388
  %v405 = vrsqrt.pop %v389
  %v406 = vrsqrt.pop %v390
  %v407 = vmul.f32 %v249, %v391
  %v408 = vmul.f32 %v254, %v392
  %v409 = vmul.f32 %v259, %v393
  %v410 = vmul.f32 %v264, %v394
  %v411 = vmul.f32 %v269, %v395
  %v412 = vmul.f32 %v274, %v396
  %v413 = vmul.f32 %v279, %v397
  %v414 = vmul.f32 %v284, %v398
  %v415 = vmul.f32 %v289, %v399
  %v416 = vmul.f32 %v294, %v400
  %v417 = vmul.f32 %v299, %v401
  %v418 = vmul.f32 %v304, %v402
  %v419 = vmul.f32 %v309, %v403
  %v420 = vmul.f32 %v314, %v404
  %v421 = vmul.f32 %v319, %v405
  %v422 = vmul.f32 %v324, %v406
  %423 = vst [vmem:[%s2] sm:$0xff] %v407
  %424 = vst [vmem:[%s2 + $0x8] sm:$0xff] %v408
  %425 = vst [vmem:[%s2 + $0x10] sm:$0xff] %v409
  %426 = vst [vmem:[%s2 + $0x18] sm:$0xff] %v410
  %427 = vst [vmem:[%s2 + $0x20] sm:$0xff] %v411
  %428 = vst [vmem:[%s2 + $0x28] sm:$0xff] %v412
  %429 = vst [vmem:[%s2 + $0x30] sm:$0xff] %v413
  %430 = vst [vmem:[%s2 + $0x38] sm:$0xff] %v414
  %431 = vst [vmem:[%s2 + $0x40] sm:$0xff] %v415
  %432 = vst [vmem:[%s2 + $0x48] sm:$0xff] %v416
  %433 = vst [vmem:[%s2 + $0x50] sm:$0xff] %v417
  %434 = vst [vmem:[%s2 + $0x58] sm:$0xff] %v418
  %435 = vst [vmem:[%s2 + $0x60] sm:$0xff] %v419
  %436 = vst [vmem:[%s2 + $0x68] sm:$0xff] %v420
  %437 = vst [vmem:[%s2 + $0x70] sm:$0xff] %v421
  %438 = vst [vmem:[%s2 + $0x78] sm:$0xff] %v422
  // Predicated region
  $region10: #{normalized_embedding.1} parent=0 // pred_check
    _
  $region11: #{normalized_embedding.1} parent=0 // pred_check_branch
    %440 = sbr.rel (0) target = $region13
  $region12: #{normalized_embedding.1} parent=0 // pred_region
    _
  $region13: #{normalized_embedding.1} parent=0 // pred_fallthru
    _
  // Predicated region
  $region14: #{normalized_embedding.1} parent=0 // pred_check
    _
  $region15: #{normalized_embedding.1} parent=0 // pred_check_branch
    %442 = sbr.rel (0) target = $region17
  $region16: #{normalized_embedding.1} parent=0 // pred_region
    _
  $region17: #{normalized_embedding.1} parent=0 // pred_fallthru
    _

</llo_original>
